<compile_context>
chip_gen: v7x
topology: tpu7x:2x2x1
jax: 0.10.0
libtpu: 0.0.40
codegen_flags: <defaults>
</compile_context>

<pallas_src>
import jax
import jax.numpy as jnp
from jax.experimental import pallas as pl
from jax.experimental.pallas import tpu as pltpu

BN_EPS = 1e-5
H1, H2 = 256, 512  # hidden widths fixed by the module


def _round_up(x, m):
    return ((x + m - 1) // m) * m


def generator_kernel(x_ref, w1_ref, w2_ref, b12_ref, w3_ref, b3_ref, out_ref, h_ref):
    # Layers 1+2 depend only on the batch tile -> compute once (first N-tile),
    # stash in VMEM scratch, reuse for every output N-tile of this batch tile.
    @pl.when(pl.program_id(1) == 0)
    def _():
        # Layer 1: Linear (BN folded into w1/b12[:, :H1]) + Tanh. Dropout = identity (eval).
        h = jnp.dot(x_ref[...], w1_ref[...], preferred_element_type=jnp.float32)
        h = jnp.tanh(h + b12_ref[:, 0:H1])
        # Layer 2: Linear (BN folded) + Tanh.
        h = jnp.dot(h.astype(w2_ref.dtype), w2_ref[...], preferred_element_type=jnp.float32)
        h = jnp.tanh(h + b12_ref[:, H1:H1 + H2])
        h_ref[...] = h.astype(h_ref.dtype)

    # Output head (tiled over the padded, lane-dense N dimension).
    out = jnp.dot(h_ref[...], w3_ref[...], preferred_element_type=jnp.float32)
    out_ref[...] = (out + b3_ref[...]).astype(out_ref.dtype)


def fold_and_pack_params(raw, compute_dtype=jnp.float32):
    """One-time transform: fold BN into Linears, pack biases, pad N lane-dense, cast."""
    s1 = raw["g1"] * jax.lax.rsqrt(raw["v1"] + BN_EPS)            # (1, 256)
    w1 = raw["w1"] * s1
    b1 = (raw["b1"] - raw["m1"]) * s1 + raw["bt1"]
    s2 = raw["g2"] * jax.lax.rsqrt(raw["v2"] + BN_EPS)            # (1, 512)
    w2 = raw["w2"] * s2
    b2 = (raw["b2"] - raw["m2"]) * s2 + raw["bt2"]
    w3, b3 = raw["w3"], raw["b3"]

    n = w3.shape[1]
    n_pad = _round_up(n, 128)                      # lane-dense output (unmasked vst)
    # Pick N-tile: cap ~2048 so the w3/out tiles fit comfortably in VMEM
    # (v7x has 64 MiB), while minimizing padding waste.
    num_tiles = pl.cdiv(n_pad, 2048)
    tn = _round_up(pl.cdiv(n_pad, num_tiles), 128)
    n_pad = tn * num_tiles
    if n_pad != n:
        w3 = jnp.pad(w3, ((0, 0), (0, n_pad - n)))
        b3 = jnp.pad(b3, ((0, 0), (0, n_pad - n)))

    return dict(
        w1=w1.astype(compute_dtype),
        w2=w2.astype(compute_dtype),
        w3=w3.astype(compute_dtype),
        # b1 & b2 packed into one operand (fewer tiny DMAs); kept f32 (added to f32 acc).
        b12=jnp.concatenate([b1, b2], axis=1).astype(jnp.float32),   # (1, 768)
        b3=b3.astype(jnp.float32),                                    # (1, n_pad)
        n_samples=n,
        tn=tn,
    )


def generator_forward(x, kp):
    """Grid over (batch tiles, output-feature tiles); weights stay VMEM-resident."""
    B, K = x.shape
    n = kp["n_samples"]
    w1, w2, w3, b12, b3 = kp["w1"], kp["w2"], kp["w3"], kp["b12"], kp["b3"]
    n_pad = w3.shape[1]
    tn = kp["tn"]
    compute_dtype = w1.dtype

    tm = min(256, _round_up(B, 8))     # fill MXU rows when B is large
    b_pad = _round_up(B, tm)
    x = x.astype(compute_dtype)
    if b_pad != B:
        x = jnp.pad(x, ((0, b_pad - B), (0, 0)))

    grid = (b_pad // tm, n_pad // tn)

    # Rough VMEM footprint: resident weights + double-buffered per-step tiles
    # + h scratch + headroom, capped at 48 MiB so it always fits v7x's 64 MiB
    # physical VMEM.
    itemsize = jnp.dtype(compute_dtype).itemsize
    resident = (w1.size + w2.size) * itemsize + b12.size * 4
    per_step = (tm * K + H2 * tn) * itemsize + (tm * tn + tn) * 4
    scratch = tm * H2 * itemsize
    vmem_budget = int(min(48 << 20, 2 * resident + 2 * per_step + scratch + (8 << 20)))

    out = pl.pallas_call(
        generator_kernel,
        out_shape=jax.ShapeDtypeStruct((b_pad, n_pad), jnp.float32),
        grid_spec=pltpu.PrefetchScalarGridSpec(
            num_scalar_prefetch=0,
            grid=grid,
            in_specs=[
                pl.BlockSpec((tm, K), lambda i, j: (i, 0)),          # x tile
                pl.BlockSpec((K, H1), lambda i, j: (0, 0)),          # w1 (resident)
                pl.BlockSpec((H1, H2), lambda i, j: (0, 0)),         # w2 (resident)
                pl.BlockSpec((1, H1 + H2), lambda i, j: (0, 0)),     # packed b1|b2
                pl.BlockSpec((H2, tn), lambda i, j: (0, j)),         # w3 N-tile
                pl.BlockSpec((1, tn), lambda i, j: (0, j)),          # b3 N-tile
            ],
            out_specs=pl.BlockSpec((tm, tn), lambda i, j: (i, j)),
            scratch_shapes=[pltpu.VMEM((tm, H2), compute_dtype)],    # hidden h
        ),
        compiler_params=pltpu.CompilerParams(
            # N axis is "arbitrary": the h scratch written at j==0 is reused
            # for all subsequent j of the same batch tile.
            dimension_semantics=("parallel", "arbitrary"),
            vmem_limit_bytes=vmem_budget,
        ),
    )(x, w1, w2, b12, w3, b3)
    return out[:B, :n]


def init_params(key, noise_len, n_samples):
    """Deterministic init mirroring PyTorch default Linear/BatchNorm init."""
    def linear(k, fan_in, fan_out):
        kw, kb = jax.random.split(k)
        bound = 1.0 / jnp.sqrt(jnp.float32(fan_in))
        w = jax.random.uniform(kw, (fan_in, fan_out), jnp.float32, -bound, bound)
        b = jax.random.uniform(kb, (1, fan_out), jnp.float32, -bound, bound)
        return w, b

    k1, k2, k3 = jax.random.split(key, 3)
    w1, b1 = linear(k1, noise_len, H1)
    w2, b2 = linear(k2, H1, H2)
    w3, b3 = linear(k3, H2, n_samples)

    def bn(h):
        return (
            jnp.ones((1, h), jnp.float32),   # gamma
            jnp.zeros((1, h), jnp.float32),  # beta
            jnp.zeros((1, h), jnp.float32),  # running_mean
            jnp.ones((1, h), jnp.float32),   # running_var
        )

    g1, bt1, m1, v1 = bn(H1)
    g2, bt2, m2, v2 = bn(H2)
    return dict(
        w1=w1, b1=b1, g1=g1, bt1=bt1, m1=m1, v1=v1,
        w2=w2, b2=b2, g2=g2, bt2=bt2, m2=m2, v2=v2,
        w3=w3, b3=b3,
    )


def reference_forward(x, p):
    """Pure-JAX eval-mode reference (unfolded BN) for correctness check."""
    h = x @ p["w1"] + p["b1"]
    h = (h - p["m1"]) * (p["g1"] / jnp.sqrt(p["v1"] + BN_EPS)) + p["bt1"]
    h = jnp.tanh(h)
    h = h @ p["w2"] + p["b2"]
    h = (h - p["m2"]) * (p["g2"] / jnp.sqrt(p["v2"] + BN_EPS)) + p["bt2"]
    h = jnp.tanh(h)
    return h @ p["w3"] + p["b3"]


if __name__ == "__main__":
    key = jax.random.PRNGKey(0)

    # Case 1: small shapes, f32 and bf16 compute paths.
    noise_len, n_samples, batch = 32, 16, 8
    kx, kp, key = jax.random.split(key, 3)
    x = jax.random.normal(kx, (batch, noise_len), jnp.float32)
    raw = init_params(kp, noise_len, n_samples)
    ref = reference_forward(x, raw)

    params_f32 = fold_and_pack_params(raw, compute_dtype=jnp.float32)
    out = jax.block_until_ready(generator_forward(x, params_f32))
    assert out.shape == (batch, n_samples), out.shape
    assert jnp.allclose(out, ref, atol=1e-4, rtol=1e-4), float(jnp.max(jnp.abs(out - ref)))

    # bf16 matmul operands (f32 accumulation) — the v6e/v7x MXU-friendly path.
    params_bf16 = fold_and_pack_params(raw, compute_dtype=jnp.bfloat16)
    out_bf16 = jax.block_until_ready(generator_forward(x, params_bf16))
    assert out_bf16.shape == (batch, n_samples), out_bf16.shape
    assert jnp.allclose(out_bf16, ref, atol=1e-1), float(jnp.max(jnp.abs(out_bf16 - ref)))

    # Case 2: non-multiple batch / output widths to exercise padding + slicing.
    noise_len2, n_samples2, batch2 = 48, 300, 20
    kx2, kp2 = jax.random.split(key)
    x2 = jax.random.normal(kx2, (batch2, noise_len2), jnp.float32)
    raw2 = init_params(kp2, noise_len2, n_samples2)
    ref2 = reference_forward(x2, raw2)
    out2 = jax.block_until_ready(
        generator_forward(x2, fold_and_pack_params(raw2, compute_dtype=jnp.float32)))
    assert out2.shape == (batch2, n_samples2), out2.shape
    assert jnp.allclose(out2, ref2, atol=1e-4, rtol=1e-4), float(jnp.max(jnp.abs(out2 - ref2)))

    print("KERNEL_OK")
</pallas_src>

<mosaic_0001>
module attributes {stable_mosaic.version = 11 : i64} {
  func.func @generator_kernel(%arg0: i32, %arg1: i32, %arg2: memref<8x32xf32, #tpu.memory_space<vmem>>, %arg3: memref<32x256xf32, #tpu.memory_space<vmem>>, %arg4: memref<256x512xf32, #tpu.memory_space<vmem>>, %arg5: memref<1x768xf32, #tpu.memory_space<vmem>>, %arg6: memref<512x128xf32, #tpu.memory_space<vmem>>, %arg7: memref<1x128xf32, #tpu.memory_space<vmem>>, %arg8: memref<8x128xf32, #tpu.memory_space<vmem>>, %arg9: memref<8x512xf32, #tpu.memory_space<vmem>>) attributes {dimension_semantics = [#tpu.dimension_semantics<parallel>, #tpu.dimension_semantics<arbitrary>], iteration_bounds = array<i64: 1, 1>, scalar_prefetch = 0 : i64, scratch_operands = 1 : i64, tpu.core_type = #tpu.core_type<tc>, window_params = [{transform_indices = @transform_0, window_bounds = array<i64: 8, 32>}, {pipeline_mode = #tpu.pipeline_mode<synchronous>, transform_indices = @transform_1, window_bounds = array<i64: 32, 256>}, {pipeline_mode = #tpu.pipeline_mode<synchronous>, transform_indices = @transform_2, window_bounds = array<i64: 256, 512>}, {pipeline_mode = #tpu.pipeline_mode<synchronous>, transform_indices = @transform_3, window_bounds = array<i64: 1, 768>}, {transform_indices = @transform_4, window_bounds = array<i64: 512, 128>}, {transform_indices = @transform_5, window_bounds = array<i64: 1, 128>}, {transform_indices = @transform_6, window_bounds = array<i64: 8, 128>}]} {
    %c0_i32 = arith.constant 0 : i32
    %0 = arith.cmpi eq, %arg1, %c0_i32 : i32
    %1 = arith.extui %0 : i1 to i32
    %c0_i32_0 = arith.constant 0 : i32
    %2 = arith.cmpi ne, %1, %c0_i32_0 : i32
    scf.if %2 {
      %c0_8 = arith.constant 0 : index
      %c0_9 = arith.constant 0 : index
      %10 = vector.load %arg2[%c0_8, %c0_9] : memref<8x32xf32, #tpu.memory_space<vmem>>, vector<8x32xf32>
      %c0_10 = arith.constant 0 : index
      %c0_11 = arith.constant 0 : index
      %11 = vector.load %arg3[%c0_10, %c0_11] : memref<32x256xf32, #tpu.memory_space<vmem>>, vector<32x256xf32>
      %cst_12 = arith.constant dense<0.000000e+00> : vector<8x256xf32>
      %12 = tpu.matmul %10, %11, %cst_12 {dimension_numbers = #tpu.dot_dimension_numbers<[1], [0], [0], [1], [0, 0, 1, 1], [], []>} : vector<8x32xf32>, vector<32x256xf32>, vector<8x256xf32> -> vector<8x256xf32>
      %c0_13 = arith.constant 0 : index
      %c0_14 = arith.constant 0 : index
      %13 = vector.load %arg5[%c0_13, %c0_14] : memref<1x768xf32, #tpu.memory_space<vmem>>, vector<1x256xf32>
      %14 = vector.broadcast %13 : vector<1x256xf32> to vector<8x256xf32>
      %15 = arith.addf %12, %14 : vector<8x256xf32>
      %16 = math.tanh %15 : vector<8x256xf32>
      %c0_15 = arith.constant 0 : index
      %c0_16 = arith.constant 0 : index
      %17 = vector.load %arg4[%c0_15, %c0_16] : memref<256x512xf32, #tpu.memory_space<vmem>>, vector<256x512xf32>
      %cst_17 = arith.constant dense<0.000000e+00> : vector<8x512xf32>
      %18 = tpu.matmul %16, %17, %cst_17 {dimension_numbers = #tpu.dot_dimension_numbers<[1], [0], [0], [1], [0, 0, 1, 1], [], []>} : vector<8x256xf32>, vector<256x512xf32>, vector<8x512xf32> -> vector<8x512xf32>
      %c0_18 = arith.constant 0 : index
      %c256 = arith.constant 256 : index
      %19 = vector.load %arg5[%c0_18, %c256] : memref<1x768xf32, #tpu.memory_space<vmem>>, vector<1x512xf32>
      %20 = vector.broadcast %19 : vector<1x512xf32> to vector<8x512xf32>
      %21 = arith.addf %18, %20 : vector<8x512xf32>
      %22 = math.tanh %21 : vector<8x512xf32>
      %c0_19 = arith.constant 0 : index
      %c0_20 = arith.constant 0 : index
      %23 = vector.load %arg9[%c0_19, %c0_20] : memref<8x512xf32, #tpu.memory_space<vmem>>, vector<8x512xf32>
      tpu.vector_store %arg9[%c0_19, %c0_20], %22 {strides = array<i32>} : memref<8x512xf32, #tpu.memory_space<vmem>>, vector<8x512xf32>,
    } else {
    }
    %c0 = arith.constant 0 : index
    %c0_1 = arith.constant 0 : index
    %3 = vector.load %arg9[%c0, %c0_1] : memref<8x512xf32, #tpu.memory_space<vmem>>, vector<8x512xf32>
    %c0_2 = arith.constant 0 : index
    %c0_3 = arith.constant 0 : index
    %4 = vector.load %arg6[%c0_2, %c0_3] : memref<512x128xf32, #tpu.memory_space<vmem>>, vector<512x128xf32>
    %cst = arith.constant dense<0.000000e+00> : vector<8x128xf32>
    %5 = tpu.matmul %3, %4, %cst {dimension_numbers = #tpu.dot_dimension_numbers<[1], [0], [0], [1], [0, 0, 1, 1], [], []>} : vector<8x512xf32>, vector<512x128xf32>, vector<8x128xf32> -> vector<8x128xf32>
    %c0_4 = arith.constant 0 : index
    %c0_5 = arith.constant 0 : index
    %6 = vector.load %arg7[%c0_4, %c0_5] : memref<1x128xf32, #tpu.memory_space<vmem>>, vector<1x128xf32>
    %7 = vector.broadcast %6 : vector<1x128xf32> to vector<8x128xf32>
    %8 = arith.addf %5, %7 : vector<8x128xf32>
    %c0_6 = arith.constant 0 : index
    %c0_7 = arith.constant 0 : index
    %9 = vector.load %arg8[%c0_6, %c0_7] : memref<8x128xf32, #tpu.memory_space<vmem>>, vector<8x128xf32>
    tpu.vector_store %arg8[%c0_6, %c0_7], %8 {strides = array<i32>} : memref<8x128xf32, #tpu.memory_space<vmem>>, vector<8x128xf32>,
    return
  }
  func.func @transform_0(%arg0: i32, %arg1: i32) -> (i32, i32) {
    %c0_i32 = arith.constant 0 : i32
    %c0_i32_0 = arith.constant 0 : i32
    return %arg0, %c0_i32 : i32, i32
  }
  func.func @transform_1(%arg0: i32, %arg1: i32) -> (i32, i32) {
    %c0_i32 = arith.constant 0 : i32
    %c0_i32_0 = arith.constant 0 : i32
    %c0_i32_1 = arith.constant 0 : i32
    return %c0_i32, %c0_i32_0 : i32, i32
  }
  func.func @transform_2(%arg0: i32, %arg1: i32) -> (i32, i32) {
    %c0_i32 = arith.constant 0 : i32
    %c0_i32_0 = arith.constant 0 : i32
    %c0_i32_1 = arith.constant 0 : i32
    return %c0_i32, %c0_i32_0 : i32, i32
  }
  func.func @transform_3(%arg0: i32, %arg1: i32) -> (i32, i32) {
    %c0_i32 = arith.constant 0 : i32
    %c0_i32_0 = arith.constant 0 : i32
    %c0_i32_1 = arith.constant 0 : i32
    return %c0_i32, %c0_i32_0 : i32, i32
  }
  func.func @transform_4(%arg0: i32, %arg1: i32) -> (i32, i32) {
    %c0_i32 = arith.constant 0 : i32
    %c0_i32_0 = arith.constant 0 : i32
    return %c0_i32, %arg1 : i32, i32
  }
  func.func @transform_5(%arg0: i32, %arg1: i32) -> (i32, i32) {
    %c0_i32 = arith.constant 0 : i32
    %c0_i32_0 = arith.constant 0 : i32
    return %c0_i32, %arg1 : i32, i32
  }
  func.func @transform_6(%arg0: i32, %arg1: i32) -> (i32, i32) {
    %c0_i32 = arith.constant 0 : i32
    return %arg0, %arg1 : i32, i32
  }
}

</mosaic_0001>

<llo_original>
// kernel: tpu_custom_call.1
$region0: #{tpu_custom_call.1}
  #allocation0 [shape = 'u32[]', space=smem, size = 0x4, offset = 0x4, fixed_abs, tag = 'smem constant byte address 0x4 - core index']
  #allocation1 [shape = 'u32[144,128]{1,0:T(1,128)}', space=vmem, size = 0x12000, scoped, tag = 'internal scratch']
  #allocation2 [shape = 'f32[8,512]{1,0:T(8,128)}', space=vmem, size = 0x4000, scoped, tag = 'scratch operand']
  %s0 = inlined_call_operand.hbm [shape: f32[8,32], index: 0, kind: input, shape index: {}]
  %s1 = inlined_call_operand.hbm [shape: f32[32,256], index: 1, kind: input, shape index: {}]
  %s2 = inlined_call_operand.hbm [shape: f32[256,512], index: 2, kind: input, shape index: {}]
  %s3 = inlined_call_operand.vmem [shape: f32[1,768], index: 3, kind: input, shape index: {}]
  %s4 = inlined_call_operand.hbm [shape: f32[512,128], index: 4, kind: input, shape index: {}]
  %s5 = inlined_call_operand.vmem [shape: f32[1,128], index: 5, kind: input, shape index: {}]
  %s6 = inlined_call_operand.hbm [shape: f32[8,128], index: 6, kind: output, shape index: {}]
  %s7 = sld [smem:[#allocation0]]
  $region54: #{tpu_custom_call.1} parent=0
    _
  %s9 = ssub.s32 1, %s7
  %s10 = scalar_select 0, %s9, %s7
  $region1: #{tpu_custom_call.1} parent=0
    #allocation3 [shape = 'u8[4096]{0}', space=vmem, size = 0x1000, scoped, tag = 'input window, operand 0, single buffered']
    #allocation4 [shape = 's32[1]{0}', space=sflag, size = 0x4, scoped, tag = 'scoped memory for tpu_custom_call.1']
    #allocation5 [shape = 's32[1]{0}', space=sflag, size = 0x4, scoped, tag = 'scoped memory for tpu_custom_call.1']
    #allocation6 [shape = 'u8[32768]{0}', space=vmem, size = 0x8000, scoped, tag = 'input window, operand 1, single buffered']
    #allocation7 [shape = 's32[1]{0}', space=sflag, size = 0x4, scoped, tag = 'scoped memory for tpu_custom_call.1']
    #allocation8 [shape = 'u8[524288]{0}', space=vmem, size = 0x80000, scoped, tag = 'input window, operand 2, single buffered']
    #allocation9 [shape = 'u8[262144]{0}', space=vmem, size = 0x40000, scoped, tag = 'input window, operand 4, single buffered']
    #allocation10 [shape = 's32[1]{0}', space=sflag, size = 0x4, scoped, tag = 'scoped memory for tpu_custom_call.1']
    #allocation11 [shape = 'u8[4096]{0}', space=vmem, size = 0x1000, scoped, tag = 'output window, operand 0, single buffered']
    %11 = vsyncpa [#allocation4], 0
    %12 = vsyncpa [#allocation7], 0
    %13 = vsyncpa [#allocation10], 0
    %14 = vsyncpa [#allocation5], 0
    // Predicated region
    $region2: #{tpu_custom_call.1} parent=1 // pred_check
      _
    $region3: #{tpu_custom_call.1} parent=1 // pred_check_branch
      %16 = sbr.rel (0) target = $region5
    $region4: #{tpu_custom_call.1} parent=1 // pred_region
      %s18 = ssub.s32 128, 128
      %19 = vsyncadd [#allocation4], %s18
      %s21 = sshll.u32 [#allocation3], 4
      %s22 = int_to_ptr.vmem [resolvable:$true] %s21
      %24 = dma.hbm_to_vmem [thread:$0]  %s0, 128, %s22, [#allocation4]
    $region5: #{tpu_custom_call.1} parent=1 // pred_fallthru
      _
    // Predicated region
    $region6: #{tpu_custom_call.1} parent=1 // pred_check
      _
    $region7: #{tpu_custom_call.1} parent=1 // pred_check_branch
      %26 = sbr.rel (0) target = $region9
    $region8: #{tpu_custom_call.1} parent=1 // pred_region
      %s28 = ssub.s32 1024, 1024
      %29 = vsyncadd [#allocation7], %s28
      %s30 = sshll.u32 [#allocation6], 4
      %s31 = int_to_ptr.vmem [resolvable:$true] %s30
      %36 = dma.hbm_to_vmem [thread:$0]  %s1, 1024, %s31, [#allocation7], 256, 256, 16
    $region9: #{tpu_custom_call.1} parent=1 // pred_fallthru
      _
    // Predicated region
    $region10: #{tpu_custom_call.1} parent=1 // pred_check
      _
    $region11: #{tpu_custom_call.1} parent=1 // pred_check_branch
      %38 = sbr.rel (0) target = $region13
    $region12: #{tpu_custom_call.1} parent=1 // pred_region
      %s40 = ssub.s32 16384, 16384
      %41 = vsyncadd [#allocation7], %s40
      %s42 = sshll.u32 [#allocation8], 4
      %s43 = int_to_ptr.vmem [resolvable:$true] %s42
      %48 = dma.hbm_to_vmem [thread:$0]  %s2, 16384, %s43, [#allocation7], 512, 512, 32
    $region13: #{tpu_custom_call.1} parent=1 // pred_fallthru
      _
    // Predicated region
    $region14: #{tpu_custom_call.1} parent=1 // pred_check
      _
    $region15: #{tpu_custom_call.1} parent=1 // pred_check_branch
      %50 = sbr.rel (0) target = $region17
    $region16: #{tpu_custom_call.1} parent=1 // pred_region
      _
    $region17: #{tpu_custom_call.1} parent=1 // pred_fallthru
      _
    // Predicated region
    $region18: #{tpu_custom_call.1} parent=1 // pred_check
      _
    $region19: #{tpu_custom_call.1} parent=1 // pred_check_branch
      %52 = sbr.rel (0) target = $region21
    $region20: #{tpu_custom_call.1} parent=1 // pred_region
      %s54 = ssub.s32 8192, 8192
      %55 = vsyncadd [#allocation10], %s54
      %s56 = sshll.u32 [#allocation9], 4
      %s57 = int_to_ptr.vmem [resolvable:$true] %s56
      %62 = dma.hbm_to_vmem [thread:$0]  %s4, 8192, %s57, [#allocation10], 128, 128, 8
    $region21: #{tpu_custom_call.1} parent=1 // pred_fallthru
      _
    // Predicated region
    $region22: #{tpu_custom_call.1} parent=1 // pred_check
      _
    $region23: #{tpu_custom_call.1} parent=1 // pred_check_branch
      %64 = sbr.rel (0) target = $region25
    $region24: #{tpu_custom_call.1} parent=1 // pred_region
      _
    $region25: #{tpu_custom_call.1} parent=1 // pred_fallthru
      _
    // Predicated region
    $region26: #{tpu_custom_call.1} parent=1 // pred_check
      _
    $region27: #{tpu_custom_call.1} parent=1 // pred_check_branch
      %66 = sbr.rel (0) target = $region29
    $region28: #{tpu_custom_call.1} parent=1 // pred_region
      %67 = dma.done [#allocation4], 128
    $region29: #{tpu_custom_call.1} parent=1 // pred_fallthru
      _
    // Predicated region
    $region30: #{tpu_custom_call.1} parent=1 // pred_check
      _
    $region31: #{tpu_custom_call.1} parent=1 // pred_check_branch
      %69 = sbr.rel (0) target = $region33
    $region32: #{tpu_custom_call.1} parent=1 // pred_region
      %70 = dma.done [#allocation7], 1024
    $region33: #{tpu_custom_call.1} parent=1 // pred_fallthru
      _
    // Predicated region
    $region34: #{tpu_custom_call.1} parent=1 // pred_check
      _
    $region35: #{tpu_custom_call.1} parent=1 // pred_check_branch
      %72 = sbr.rel (0) target = $region37
    $region36: #{tpu_custom_call.1} parent=1 // pred_region
      %73 = dma.done [#allocation7], 16384
    $region37: #{tpu_custom_call.1} parent=1 // pred_fallthru
      _
    // Predicated region
    $region38: #{tpu_custom_call.1} parent=1 // pred_check
      _
    $region39: #{tpu_custom_call.1} parent=1 // pred_check_branch
      %75 = sbr.rel (0) target = $region41
    $region40: #{tpu_custom_call.1} parent=1 // pred_region
      %76 = dma.done [#allocation10], 8192
    $region41: #{tpu_custom_call.1} parent=1 // pred_fallthru
      _
    %p77 = scmp.eq.s32.totalorder 0, 0
    // Predicated region
    $region42: #{tpu_custom_call.1} parent=1 // pred_check
      %p78 = pneg %p77
    $region43: #{tpu_custom_call.1} parent=1 // pred_check_branch
      %80 = sbr.rel (%p78) target = $region45
    $region44: #{tpu_custom_call.1} parent=1 // pred_region
      %v81 = vld [vmem:[#allocation3] sm:$0xff]
      %v82 = vld [vmem:[#allocation6] sm:$0xff]
      %v83 = vld [vmem:[#allocation6 + $0x8] sm:$0xff]
      %v84 = vld [vmem:[#allocation6 + $0x10] sm:$0xff]
      %v85 = vld [vmem:[#allocation6 + $0x18] sm:$0xff]
      %v86 = vld [vmem:[#allocation6 + $0x20] sm:$0xff]
      %v87 = vld [vmem:[#allocation6 + $0x28] sm:$0xff]
      %v88 = vld [vmem:[#allocation6 + $0x30] sm:$0xff]
      %v89 = vld [vmem:[#allocation6 + $0x38] sm:$0xff]
      %v90 = vld [vmem:[%s3] sm:$0x3]
      %v92 = vlaneseq
      %v93 = vshrl.u32 %v92, 7
      %v94 = vsub.s32 0, %v93
      %v95 = vrot.slane %v90, %v94
      %v96 = vlaneseq
      %v97 = vshrl.u32 %v96, 7
      %v98 = vsub.s32 1, %v97
      %v99 = vrot.slane %v90, %v98
      %vm102 = vcmask 261120
      %v104 = vsel %vm102, %v81, 0
      %106 = vmatprep.subr.mxu0 %v83
      %107 = vmatpush1.msra.mxu0 %v82
      %108 = vmatprep.subr.mxu0 %v85
      %109 = vmatpush1.msra.mxu0 %v84
      %110 = vmatprep.subr.mxu0 %v87
      %111 = vmatpush1.msra.mxu0 %v86
      %112 = vmatprep.subr.mxu0 %v89
      %113 = vmatpush1.msra.mxu0 %v88
      %114 = vmatprep.subr.mxu0 0.0
      %115 = vmatpush1.msra.mxu0 0.0
      %116 = vmatprep.subr.mxu0 0.0
      %117 = vmatpush1.msra.mxu0 0.0
      %118 = vmatprep.subr.mxu0 0.0
      %119 = vmatpush1.msra.mxu0 0.0
      %120 = vmatprep.subr.mxu0 0.0
      %121 = vmatpush1.msra.mxu0 0.0
      %122 = vmatprep.subr.mxu0 0.0
      %123 = vmatpush1.msra.mxu0 0.0
      %124 = vmatprep.subr.mxu0 0.0
      %125 = vmatpush1.msra.mxu0 0.0
      %126 = vmatprep.subr.mxu0 0.0
      %127 = vmatpush1.msra.mxu0 0.0
      %128 = vmatprep.subr.mxu0 0.0
      %129 = vmatpush1.msra.mxu0 0.0
      %130 = vmatprep.subr.mxu0 0.0
      %131 = vmatpush1.msra.mxu0 0.0
      %132 = vmatprep.subr.mxu0 0.0
      %133 = vmatpush1.msra.mxu0 0.0
      %134 = vmatprep.subr.mxu0 0.0
      %135 = vmatpush1.msra.mxu0 0.0
      %136 = vmatprep.subr.mxu0 0.0
      %137 = vmatpush1.msra.mxu0 0.0
      %138 = vmatprep.subr.mxu0 0.0
      %139 = vmatpush1.msra.mxu0 0.0
      %140 = vmatprep.subr.mxu0 0.0
      %141 = vmatpush1.msra.mxu0 0.0
      %142 = vmatprep.subr.mxu0 0.0
      %143 = vmatpush1.msra.mxu0 0.0
      %144 = vmatprep.subr.mxu0 0.0
      %145 = vmatpush1.msra.mxu0 0.0
      %146 = vmatprep.subr.mxu0 0.0
      %147 = vmatpush1.msra.mxu0 0.0
      %148 = vmatprep.subr.mxu0 0.0
      %149 = vmatpush1.msra.mxu0 0.0
      %150 = vmatprep.subr.mxu0 0.0
      %151 = vmatpush1.msra.mxu0 0.0
      %152 = vmatprep.subr.mxu0 0.0
      %153 = vmatpush1.msra.mxu0 0.0
      %154 = vmatprep.subr.mxu0 0.0
      %155 = vmatpush1.msra.mxu0 0.0
      %156 = vmatprep.subr.mxu0 0.0
      %157 = vmatpush1.msra.mxu0 0.0
      %158 = vmatprep.subr.mxu0 0.0
      %159 = vmatpush1.msra.mxu0 0.0
      %160 = vmatprep.subr.mxu0 0.0
      %161 = vmatpush1.msra.mxu0 0.0
      %162 = vmatprep.subr.mxu0 0.0
      %163 = vmatpush1.msra.mxu0 0.0
      %164 = vmatprep.subr.mxu0 0.0
      %165 = vmatpush1.msra.mxu0 0.0
      %166 = vmatprep.subr.mxu0 0.0
      %167 = vmatpush1.msra.mxu0 0.0
      %168 = vmatprep.subr.mxu0 0.0
      %169 = vmatpush1.msra.mxu0 0.0
      %170 = vmatprep.mubr.f32.mxu0 0.0
      %171 = vmatmul.mubr.f32.gmra.mrb[0].mxu0 %v104
      %v172 = vpop.f32.mrb[0].mxu0
      %v173 = vadd.f32 %v95, %v172
      %v174 = vpop.f32.mrb[0].mxu0
      %v175 = vadd.f32 %v99, %v174
      %176 = vdwg.mxu0
      %v177 = vtanh.pop %v173
      %v178 = vtanh.pop %v175
      %v179 = vld [vmem:[#allocation8] sm:$0xff]
      %v180 = vld [vmem:[#allocation8 + $0x8] sm:$0xff]
      %v181 = vld [vmem:[#allocation8 + $0x10] sm:$0xff]
      %v182 = vld [vmem:[#allocation8 + $0x18] sm:$0xff]
      %v183 = vld [vmem:[#allocation8 + $0x20] sm:$0xff]
      %v184 = vld [vmem:[#allocation8 + $0x28] sm:$0xff]
      %v185 = vld [vmem:[#allocation8 + $0x30] sm:$0xff]
      %v186 = vld [vmem:[#allocation8 + $0x38] sm:$0xff]
      %v187 = vld [vmem:[#allocation8 + $0x40] sm:$0xff]
      %v188 = vld [vmem:[#allocation8 + $0x48] sm:$0xff]
      %v189 = vld [vmem:[#allocation8 + $0x50] sm:$0xff]
      %v190 = vld [vmem:[#allocation8 + $0x58] sm:$0xff]
      %v191 = vld [vmem:[#allocation8 + $0x60] sm:$0xff]
      %v192 = vld [vmem:[#allocation8 + $0x68] sm:$0xff]
      %v193 = vld [vmem:[#allocation8 + $0x70] sm:$0xff]
      %v194 = vld [vmem:[#allocation8 + $0x78] sm:$0xff]
      %v195 = vld [vmem:[#allocation8 + $0x80] sm:$0xff]
      %v196 = vld [vmem:[#allocation8 + $0x88] sm:$0xff]
      %v197 = vld [vmem:[#allocation8 + $0x90] sm:$0xff]
      %v198 = vld [vmem:[#allocation8 + $0x98] sm:$0xff]
      %v199 = vld [vmem:[#allocation8 + $0xa0] sm:$0xff]
      %v200 = vld [vmem:[#allocation8 + $0xa8] sm:$0xff]
      %v201 = vld [vmem:[#allocation8 + $0xb0] sm:$0xff]
      %v202 = vld [vmem:[#allocation8 + $0xb8] sm:$0xff]
      %v203 = vld [vmem:[#allocation8 + $0xc0] sm:$0xff]
      %v204 = vld [vmem:[#allocation8 + $0xc8] sm:$0xff]
      %v205 = vld [vmem:[#allocation8 + $0xd0] sm:$0xff]
      %v206 = vld [vmem:[#allocation8 + $0xd8] sm:$0xff]
      %v207 = vld [vmem:[#allocation8 + $0xe0] sm:$0xff]
      %v208 = vld [vmem:[#allocation8 + $0xe8] sm:$0xff]
      %v209 = vld [vmem:[#allocation8 + $0xf0] sm:$0xff]
      %v210 = vld [vmem:[#allocation8 + $0xf8] sm:$0xff]
      %v211 = vld [vmem:[#allocation8 + $0x100] sm:$0xff]
      %v212 = vld [vmem:[#allocation8 + $0x108] sm:$0xff]
      %v213 = vld [vmem:[#allocation8 + $0x110] sm:$0xff]
      %v214 = vld [vmem:[#allocation8 + $0x118] sm:$0xff]
      %v215 = vld [vmem:[#allocation8 + $0x120] sm:$0xff]
      %v216 = vld [vmem:[#allocation8 + $0x128] sm:$0xff]
      %v217 = vld [vmem:[#allocation8 + $0x130] sm:$0xff]
      %v218 = vld [vmem:[#allocation8 + $0x138] sm:$0xff]
      %v219 = vld [vmem:[#allocation8 + $0x140] sm:$0xff]
      %v220 = vld [vmem:[#allocation8 + $0x148] sm:$0xff]
      %v221 = vld [vmem:[#allocation8 + $0x150] sm:$0xff]
      %v222 = vld [vmem:[#allocation8 + $0x158] sm:$0xff]
      %v223 = vld [vmem:[#allocation8 + $0x160] sm:$0xff]
      %v224 = vld [vmem:[#allocation8 + $0x168] sm:$0xff]
      %v225 = vld [vmem:[#allocation8 + $0x170] sm:$0xff]
      %v226 = vld [vmem:[#allocation8 + $0x178] sm:$0xff]
      %v227 = vld [vmem:[#allocation8 + $0x180] sm:$0xff]
      %v228 = vld [vmem:[#allocation8 + $0x188] sm:$0xff]
      %v229 = vld [vmem:[#allocation8 + $0x190] sm:$0xff]
      %v230 = vld [vmem:[#allocation8 + $0x198] sm:$0xff]
      %v231 = vld [vmem:[#allocation8 + $0x1a0] sm:$0xff]
      %v232 = vld [vmem:[#allocation8 + $0x1a8] sm:$0xff]
      %v233 = vld [vmem:[#allocation8 + $0x1b0] sm:$0xff]
      %v234 = vld [vmem:[#allocation8 + $0x1b8] sm:$0xff]
      %v235 = vld [vmem:[#allocation8 + $0x1c0] sm:$0xff]
      %v236 = vld [vmem:[#allocation8 + $0x1c8] sm:$0xff]
      %v237 = vld [vmem:[#allocation8 + $0x1d0] sm:$0xff]
      %v238 = vld [vmem:[#allocation8 + $0x1d8] sm:$0xff]
      %v239 = vld [vmem:[#allocation8 + $0x1e0] sm:$0xff]
      %v240 = vld [vmem:[#allocation8 + $0x1e8] sm:$0xff]
      %v241 = vld [vmem:[#allocation8 + $0x1f0] sm:$0xff]
      %v242 = vld [vmem:[#allocation8 + $0x1f8] sm:$0xff]
      %v243 = vld [vmem:[#allocation8 + $0x200] sm:$0xff]
      %v244 = vld [vmem:[#allocation8 + $0x208] sm:$0xff]
      %v245 = vld [vmem:[#allocation8 + $0x210] sm:$0xff]
      %v246 = vld [vmem:[#allocation8 + $0x218] sm:$0xff]
      %v247 = vld [vmem:[#allocation8 + $0x220] sm:$0xff]
      %v248 = vld [vmem:[#allocation8 + $0x228] sm:$0xff]
      %v249 = vld [vmem:[#allocation8 + $0x230] sm:$0xff]
      %v250 = vld [vmem:[#allocation8 + $0x238] sm:$0xff]
      %v251 = vld [vmem:[#allocation8 + $0x240] sm:$0xff]
      %v252 = vld [vmem:[#allocation8 + $0x248] sm:$0xff]
      %v253 = vld [vmem:[#allocation8 + $0x250] sm:$0xff]
      %v254 = vld [vmem:[#allocation8 + $0x258] sm:$0xff]
      %v255 = vld [vmem:[#allocation8 + $0x260] sm:$0xff]
      %v256 = vld [vmem:[#allocation8 + $0x268] sm:$0xff]
      %v257 = vld [vmem:[#allocation8 + $0x270] sm:$0xff]
      %v258 = vld [vmem:[#allocation8 + $0x278] sm:$0xff]
      %v259 = vld [vmem:[#allocation8 + $0x280] sm:$0xff]
      %v260 = vld [vmem:[#allocation8 + $0x288] sm:$0xff]
      %v261 = vld [vmem:[#allocation8 + $0x290] sm:$0xff]
      %v262 = vld [vmem:[#allocation8 + $0x298] sm:$0xff]
      %v263 = vld [vmem:[#allocation8 + $0x2a0] sm:$0xff]
      %v264 = vld [vmem:[#allocation8 + $0x2a8] sm:$0xff]
      %v265 = vld [vmem:[#allocation8 + $0x2b0] sm:$0xff]
      %v266 = vld [vmem:[#allocation8 + $0x2b8] sm:$0xff]
      %v267 = vld [vmem:[#allocation8 + $0x2c0] sm:$0xff]
      %v268 = vld [vmem:[#allocation8 + $0x2c8] sm:$0xff]
      %v269 = vld [vmem:[#allocation8 + $0x2d0] sm:$0xff]
      %v270 = vld [vmem:[#allocation8 + $0x2d8] sm:$0xff]
      %v271 = vld [vmem:[#allocation8 + $0x2e0] sm:$0xff]
      %v272 = vld [vmem:[#allocation8 + $0x2e8] sm:$0xff]
      %v273 = vld [vmem:[#allocation8 + $0x2f0] sm:$0xff]
      %v274 = vld [vmem:[#allocation8 + $0x2f8] sm:$0xff]
      %v275 = vld [vmem:[#allocation8 + $0x300] sm:$0xff]
      %v276 = vld [vmem:[#allocation8 + $0x308] sm:$0xff]
      %v277 = vld [vmem:[#allocation8 + $0x310] sm:$0xff]
      %v278 = vld [vmem:[#allocation8 + $0x318] sm:$0xff]
      %v279 = vld [vmem:[#allocation8 + $0x320] sm:$0xff]
      %v280 = vld [vmem:[#allocation8 + $0x328] sm:$0xff]
      %v281 = vld [vmem:[#allocation8 + $0x330] sm:$0xff]
      %v282 = vld [vmem:[#allocation8 + $0x338] sm:$0xff]
      %v283 = vld [vmem:[#allocation8 + $0x340] sm:$0xff]
      %v284 = vld [vmem:[#allocation8 + $0x348] sm:$0xff]
      %v285 = vld [vmem:[#allocation8 + $0x350] sm:$0xff]
      %v286 = vld [vmem:[#allocation8 + $0x358] sm:$0xff]
      %v287 = vld [vmem:[#allocation8 + $0x360] sm:$0xff]
      %v288 = vld [vmem:[#allocation8 + $0x368] sm:$0xff]
      %v289 = vld [vmem:[#allocation8 + $0x370] sm:$0xff]
      %v290 = vld [vmem:[#allocation8 + $0x378] sm:$0xff]
      %v291 = vld [vmem:[#allocation8 + $0x380] sm:$0xff]
      %v292 = vld [vmem:[#allocation8 + $0x388] sm:$0xff]
      %v293 = vld [vmem:[#allocation8 + $0x390] sm:$0xff]
      %v294 = vld [vmem:[#allocation8 + $0x398] sm:$0xff]
      %v295 = vld [vmem:[#allocation8 + $0x3a0] sm:$0xff]
      %v296 = vld [vmem:[#allocation8 + $0x3a8] sm:$0xff]
      %v297 = vld [vmem:[#allocation8 + $0x3b0] sm:$0xff]
      %v298 = vld [vmem:[#allocation8 + $0x3b8] sm:$0xff]
      %v299 = vld [vmem:[#allocation8 + $0x3c0] sm:$0xff]
      %v300 = vld [vmem:[#allocation8 + $0x3c8] sm:$0xff]
      %v301 = vld [vmem:[#allocation8 + $0x3d0] sm:$0xff]
      %v302 = vld [vmem:[#allocation8 + $0x3d8] sm:$0xff]
      %v303 = vld [vmem:[#allocation8 + $0x3e0] sm:$0xff]
      %v304 = vld [vmem:[#allocation8 + $0x3e8] sm:$0xff]
      %v305 = vld [vmem:[#allocation8 + $0x3f0] sm:$0xff]
      %v306 = vld [vmem:[#allocation8 + $0x3f8] sm:$0xff]
      %v307 = vld [vmem:[%s3 + $0x2] sm:$0xf]
      %v309 = vlaneseq
      %v310 = vshrl.u32 %v309, 7
      %v311 = vsub.s32 0, %v310
      %v312 = vrot.slane %v307, %v311
      %v313 = vlaneseq
      %v314 = vshrl.u32 %v313, 7
      %v315 = vsub.s32 1, %v314
      %v316 = vrot.slane %v307, %v315
      %v317 = vlaneseq
      %v318 = vshrl.u32 %v317, 7
      %v319 = vsub.s32 2, %v318
      %v320 = vrot.slane %v307, %v319
      %v321 = vlaneseq
      %v322 = vshrl.u32 %v321, 7
      %v323 = vsub.s32 3, %v322
      %v324 = vrot.slane %v307, %v323
      %329 = vmatprep.subr.mxu0 %v180
      %330 = vmatpush1.msra.mxu0 %v179
      %331 = vmatprep.subr.mxu0 %v184
      %332 = vmatpush1.msra.mxu0 %v183
      %333 = vmatprep.subr.mxu0 %v188
      %334 = vmatpush1.msra.mxu0 %v187
      %335 = vmatprep.subr.mxu0 %v192
      %336 = vmatpush1.msra.mxu0 %v191
      %337 = vmatprep.subr.mxu0 %v196
      %338 = vmatpush1.msra.mxu0 %v195
      %339 = vmatprep.subr.mxu0 %v200
      %340 = vmatpush1.msra.mxu0 %v199
      %341 = vmatprep.subr.mxu0 %v204
      %342 = vmatpush1.msra.mxu0 %v203
      %343 = vmatprep.subr.mxu0 %v208
      %344 = vmatpush1.msra.mxu0 %v207
      %345 = vmatprep.subr.mxu0 %v212
      %346 = vmatpush1.msra.mxu0 %v211
      %347 = vmatprep.subr.mxu0 %v216
      %348 = vmatpush1.msra.mxu0 %v215
      %349 = vmatprep.subr.mxu0 %v220
      %350 = vmatpush1.msra.mxu0 %v219
      %351 = vmatprep.subr.mxu0 %v224
      %352 = vmatpush1.msra.mxu0 %v223
      %353 = vmatprep.subr.mxu0 %v228
      %354 = vmatpush1.msra.mxu0 %v227
      %355 = vmatprep.subr.mxu0 %v232
      %356 = vmatpush1.msra.mxu0 %v231
      %357 = vmatprep.subr.mxu0 %v236
      %358 = vmatpush1.msra.mxu0 %v235
      %359 = vmatprep.subr.mxu0 %v240
      %360 = vmatpush1.msra.mxu0 %v239
      %361 = vmatprep.subr.mxu0 %v244
      %362 = vmatpush1.msra.mxu0 %v243
      %363 = vmatprep.subr.mxu0 %v248
      %364 = vmatpush1.msra.mxu0 %v247
      %365 = vmatprep.subr.mxu0 %v252
      %366 = vmatpush1.msra.mxu0 %v251
      %367 = vmatprep.subr.mxu0 %v256
      %368 = vmatpush1.msra.mxu0 %v255
      %369 = vmatprep.subr.mxu0 %v260
      %370 = vmatpush1.msra.mxu0 %v259
      %371 = vmatprep.subr.mxu0 %v264
      %372 = vmatpush1.msra.mxu0 %v263
      %373 = vmatprep.subr.mxu0 %v268
      %374 = vmatpush1.msra.mxu0 %v267
      %375 = vmatprep.subr.mxu0 %v272
      %376 = vmatpush1.msra.mxu0 %v271
      %377 = vmatprep.subr.mxu0 %v276
      %378 = vmatpush1.msra.mxu0 %v275
      %379 = vmatprep.subr.mxu0 %v280
      %380 = vmatpush1.msra.mxu0 %v279
      %381 = vmatprep.subr.mxu0 %v284
      %382 = vmatpush1.msra.mxu0 %v283
      %383 = vmatprep.subr.mxu0 %v288
      %384 = vmatpush1.msra.mxu0 %v287
      %385 = vmatprep.subr.mxu0 %v292
      %386 = vmatpush1.msra.mxu0 %v291
      %387 = vmatprep.subr.mxu0 %v296
      %388 = vmatpush1.msra.mxu0 %v295
      %389 = vmatprep.subr.mxu0 %v300
      %390 = vmatpush1.msra.mxu0 %v299
      %391 = vmatprep.subr.mxu0 %v304
      %392 = vmatpush1.msra.mxu0 %v303
      %393 = vmatprep.mubr.f32.mxu0 %v178
      %394 = vmatmul.mubr.f32.gmra.mrb[0].mxu0 %v177
      %v395 = vpop.f32.mrb[0].mxu0
      %v396 = vadd.f32 %v312, %v395
      %v397 = vpop.f32.mrb[0].mxu0
      %v398 = vadd.f32 %v316, %v397
      %399 = vdwg.mxu0
      %400 = vmatprep.subr.mxu0 %v182
      %401 = vmatpush1.msra.mxu0 %v181
      %402 = vmatprep.subr.mxu0 %v186
      %403 = vmatpush1.msra.mxu0 %v185
      %404 = vmatprep.subr.mxu0 %v190
      %405 = vmatpush1.msra.mxu0 %v189
      %406 = vmatprep.subr.mxu0 %v194
      %407 = vmatpush1.msra.mxu0 %v193
      %408 = vmatprep.subr.mxu0 %v198
      %409 = vmatpush1.msra.mxu0 %v197
      %410 = vmatprep.subr.mxu0 %v202
      %411 = vmatpush1.msra.mxu0 %v201
      %412 = vmatprep.subr.mxu0 %v206
      %413 = vmatpush1.msra.mxu0 %v205
      %414 = vmatprep.subr.mxu0 %v210
      %415 = vmatpush1.msra.mxu0 %v209
      %416 = vmatprep.subr.mxu0 %v214
      %417 = vmatpush1.msra.mxu0 %v213
      %418 = vmatprep.subr.mxu0 %v218
      %419 = vmatpush1.msra.mxu0 %v217
      %420 = vmatprep.subr.mxu0 %v222
      %421 = vmatpush1.msra.mxu0 %v221
      %422 = vmatprep.subr.mxu0 %v226
      %423 = vmatpush1.msra.mxu0 %v225
      %424 = vmatprep.subr.mxu0 %v230
      %425 = vmatpush1.msra.mxu0 %v229
      %426 = vmatprep.subr.mxu0 %v234
      %427 = vmatpush1.msra.mxu0 %v233
      %428 = vmatprep.subr.mxu0 %v238
      %429 = vmatpush1.msra.mxu0 %v237
      %430 = vmatprep.subr.mxu0 %v242
      %431 = vmatpush1.msra.mxu0 %v241
      %432 = vmatprep.subr.mxu0 %v246
      %433 = vmatpush1.msra.mxu0 %v245
      %434 = vmatprep.subr.mxu0 %v250
      %435 = vmatpush1.msra.mxu0 %v249
      %436 = vmatprep.subr.mxu0 %v254
      %437 = vmatpush1.msra.mxu0 %v253
      %438 = vmatprep.subr.mxu0 %v258
      %439 = vmatpush1.msra.mxu0 %v257
      %440 = vmatprep.subr.mxu0 %v262
      %441 = vmatpush1.msra.mxu0 %v261
      %442 = vmatprep.subr.mxu0 %v266
      %443 = vmatpush1.msra.mxu0 %v265
      %444 = vmatprep.subr.mxu0 %v270
      %445 = vmatpush1.msra.mxu0 %v269
      %446 = vmatprep.subr.mxu0 %v274
      %447 = vmatpush1.msra.mxu0 %v273
      %448 = vmatprep.subr.mxu0 %v278
      %449 = vmatpush1.msra.mxu0 %v277
      %450 = vmatprep.subr.mxu0 %v282
      %451 = vmatpush1.msra.mxu0 %v281
      %452 = vmatprep.subr.mxu0 %v286
      %453 = vmatpush1.msra.mxu0 %v285
      %454 = vmatprep.subr.mxu0 %v290
      %455 = vmatpush1.msra.mxu0 %v289
      %456 = vmatprep.subr.mxu0 %v294
      %457 = vmatpush1.msra.mxu0 %v293
      %458 = vmatprep.subr.mxu0 %v298
      %459 = vmatpush1.msra.mxu0 %v297
      %460 = vmatprep.subr.mxu0 %v302
      %461 = vmatpush1.msra.mxu0 %v301
      %462 = vmatprep.subr.mxu0 %v306
      %463 = vmatpush1.msra.mxu0 %v305
      %464 = vmatprep.mubr.f32.mxu0 %v178
      %465 = vmatmul.mubr.f32.gmra.mrb[0].mxu0 %v177
      %v466 = vpop.f32.mrb[0].mxu0
      %v467 = vadd.f32 %v320, %v466
      %v468 = vpop.f32.mrb[0].mxu0
      %v469 = vadd.f32 %v324, %v468
      %470 = vdwg.mxu0
      %v471 = vtanh.pop %v396
      %v472 = vtanh.pop %v398
      %v473 = vtanh.pop %v467
      %v474 = vtanh.pop %v469
      %475 = vst [vmem:[#allocation2] sm:$0xff] %v471
      %476 = vst [vmem:[#allocation2 + $0x8] sm:$0xff] %v472
      %477 = vst [vmem:[#allocation2 + $0x10] sm:$0xff] %v473
      %478 = vst [vmem:[#allocation2 + $0x18] sm:$0xff] %v474
    $region45: #{tpu_custom_call.1} parent=1 // pred_fallthru
      _
    %v479 = vld [vmem:[#allocation2] sm:$0xff]
    %v480 = vld [vmem:[#allocation2 + $0x8] sm:$0xff]
    %v481 = vld [vmem:[#allocation2 + $0x10] sm:$0xff]
    %v482 = vld [vmem:[#allocation2 + $0x18] sm:$0xff]
    %v483 = vld [vmem:[#allocation9] sm:$0xff]
    %v484 = vld [vmem:[#allocation9 + $0x8] sm:$0xff]
    %v485 = vld [vmem:[#allocation9 + $0x10] sm:$0xff]
    %v486 = vld [vmem:[#allocation9 + $0x18] sm:$0xff]
    %v487 = vld [vmem:[#allocation9 + $0x20] sm:$0xff]
    %v488 = vld [vmem:[#allocation9 + $0x28] sm:$0xff]
    %v489 = vld [vmem:[#allocation9 + $0x30] sm:$0xff]
    %v490 = vld [vmem:[#allocation9 + $0x38] sm:$0xff]
    %v491 = vld [vmem:[#allocation9 + $0x40] sm:$0xff]
    %v492 = vld [vmem:[#allocation9 + $0x48] sm:$0xff]
    %v493 = vld [vmem:[#allocation9 + $0x50] sm:$0xff]
    %v494 = vld [vmem:[#allocation9 + $0x58] sm:$0xff]
    %v495 = vld [vmem:[#allocation9 + $0x60] sm:$0xff]
    %v496 = vld [vmem:[#allocation9 + $0x68] sm:$0xff]
    %v497 = vld [vmem:[#allocation9 + $0x70] sm:$0xff]
    %v498 = vld [vmem:[#allocation9 + $0x78] sm:$0xff]
    %v499 = vld [vmem:[#allocation9 + $0x80] sm:$0xff]
    %v500 = vld [vmem:[#allocation9 + $0x88] sm:$0xff]
    %v501 = vld [vmem:[#allocation9 + $0x90] sm:$0xff]
    %v502 = vld [vmem:[#allocation9 + $0x98] sm:$0xff]
    %v503 = vld [vmem:[#allocation9 + $0xa0] sm:$0xff]
    %v504 = vld [vmem:[#allocation9 + $0xa8] sm:$0xff]
    %v505 = vld [vmem:[#allocation9 + $0xb0] sm:$0xff]
    %v506 = vld [vmem:[#allocation9 + $0xb8] sm:$0xff]
    %v507 = vld [vmem:[#allocation9 + $0xc0] sm:$0xff]
    %v508 = vld [vmem:[#allocation9 + $0xc8] sm:$0xff]
    %v509 = vld [vmem:[#allocation9 + $0xd0] sm:$0xff]
    %v510 = vld [vmem:[#allocation9 + $0xd8] sm:$0xff]
    %v511 = vld [vmem:[#allocation9 + $0xe0] sm:$0xff]
    %v512 = vld [vmem:[#allocation9 + $0xe8] sm:$0xff]
    %v513 = vld [vmem:[#allocation9 + $0xf0] sm:$0xff]
    %v514 = vld [vmem:[#allocation9 + $0xf8] sm:$0xff]
    %v515 = vld [vmem:[#allocation9 + $0x100] sm:$0xff]
    %v516 = vld [vmem:[#allocation9 + $0x108] sm:$0xff]
    %v517 = vld [vmem:[#allocation9 + $0x110] sm:$0xff]
    %v518 = vld [vmem:[#allocation9 + $0x118] sm:$0xff]
    %v519 = vld [vmem:[#allocation9 + $0x120] sm:$0xff]
    %v520 = vld [vmem:[#allocation9 + $0x128] sm:$0xff]
    %v521 = vld [vmem:[#allocation9 + $0x130] sm:$0xff]
    %v522 = vld [vmem:[#allocation9 + $0x138] sm:$0xff]
    %v523 = vld [vmem:[#allocation9 + $0x140] sm:$0xff]
    %v524 = vld [vmem:[#allocation9 + $0x148] sm:$0xff]
    %v525 = vld [vmem:[#allocation9 + $0x150] sm:$0xff]
    %v526 = vld [vmem:[#allocation9 + $0x158] sm:$0xff]
    %v527 = vld [vmem:[#allocation9 + $0x160] sm:$0xff]
    %v528 = vld [vmem:[#allocation9 + $0x168] sm:$0xff]
    %v529 = vld [vmem:[#allocation9 + $0x170] sm:$0xff]
    %v530 = vld [vmem:[#allocation9 + $0x178] sm:$0xff]
    %v531 = vld [vmem:[#allocation9 + $0x180] sm:$0xff]
    %v532 = vld [vmem:[#allocation9 + $0x188] sm:$0xff]
    %v533 = vld [vmem:[#allocation9 + $0x190] sm:$0xff]
    %v534 = vld [vmem:[#allocation9 + $0x198] sm:$0xff]
    %v535 = vld [vmem:[#allocation9 + $0x1a0] sm:$0xff]
    %v536 = vld [vmem:[#allocation9 + $0x1a8] sm:$0xff]
    %v537 = vld [vmem:[#allocation9 + $0x1b0] sm:$0xff]
    %v538 = vld [vmem:[#allocation9 + $0x1b8] sm:$0xff]
    %v539 = vld [vmem:[#allocation9 + $0x1c0] sm:$0xff]
    %v540 = vld [vmem:[#allocation9 + $0x1c8] sm:$0xff]
    %v541 = vld [vmem:[#allocation9 + $0x1d0] sm:$0xff]
    %v542 = vld [vmem:[#allocation9 + $0x1d8] sm:$0xff]
    %v543 = vld [vmem:[#allocation9 + $0x1e0] sm:$0xff]
    %v544 = vld [vmem:[#allocation9 + $0x1e8] sm:$0xff]
    %v545 = vld [vmem:[#allocation9 + $0x1f0] sm:$0xff]
    %v546 = vld [vmem:[#allocation9 + $0x1f8] sm:$0xff]
    %v547 = vld [vmem:[%s5] sm:$0x1]
    %v549 = vlaneseq
    %v550 = vshrl.u32 %v549, 7
    %v551 = vsub.s32 0, %v550
    %v552 = vrot.slane %v547, %v551
    %554 = vmatprep.subr.mxu0 0.0
    %555 = vmatpush1.msra.mxu0 %v483
    %556 = vmatprep.subr.mxu0 0.0
    %557 = vmatpush1.msra.mxu0 %v484
    %558 = vmatprep.subr.mxu0 0.0
    %559 = vmatpush1.msra.mxu0 %v485
    %560 = vmatprep.subr.mxu0 0.0
    %561 = vmatpush1.msra.mxu0 %v486
    %562 = vmatprep.subr.mxu0 0.0
    %563 = vmatpush1.msra.mxu0 %v487
    %564 = vmatprep.subr.mxu0 0.0
    %565 = vmatpush1.msra.mxu0 %v488
    %566 = vmatprep.subr.mxu0 0.0
    %567 = vmatpush1.msra.mxu0 %v489
    %568 = vmatprep.subr.mxu0 0.0
    %569 = vmatpush1.msra.mxu0 %v490
    %570 = vmatprep.subr.mxu0 0.0
    %571 = vmatpush1.msra.mxu0 %v491
    %572 = vmatprep.subr.mxu0 0.0
    %573 = vmatpush1.msra.mxu0 %v492
    %574 = vmatprep.subr.mxu0 0.0
    %575 = vmatpush1.msra.mxu0 %v493
    %576 = vmatprep.subr.mxu0 0.0
    %577 = vmatpush1.msra.mxu0 %v494
    %578 = vmatprep.subr.mxu0 0.0
    %579 = vmatpush1.msra.mxu0 %v495
    %580 = vmatprep.subr.mxu0 0.0
    %581 = vmatpush1.msra.mxu0 %v496
    %582 = vmatprep.subr.mxu0 0.0
    %583 = vmatpush1.msra.mxu0 %v497
    %584 = vmatprep.subr.mxu0 0.0
    %585 = vmatpush1.msra.mxu0 %v498
    %586 = vmatprep.subr.mxu0 0.0
    %587 = vmatpush1.msra.mxu0 %v499
    %588 = vmatprep.subr.mxu0 0.0
    %589 = vmatpush1.msra.mxu0 %v500
    %590 = vmatprep.subr.mxu0 0.0
    %591 = vmatpush1.msra.mxu0 %v501
    %592 = vmatprep.subr.mxu0 0.0
    %593 = vmatpush1.msra.mxu0 %v502
    %594 = vmatprep.subr.mxu0 0.0
    %595 = vmatpush1.msra.mxu0 %v503
    %596 = vmatprep.subr.mxu0 0.0
    %597 = vmatpush1.msra.mxu0 %v504
    %598 = vmatprep.subr.mxu0 0.0
    %599 = vmatpush1.msra.mxu0 %v505
    %600 = vmatprep.subr.mxu0 0.0
    %601 = vmatpush1.msra.mxu0 %v506
    %602 = vmatprep.subr.mxu0 0.0
    %603 = vmatpush1.msra.mxu0 %v507
    %604 = vmatprep.subr.mxu0 0.0
    %605 = vmatpush1.msra.mxu0 %v508
    %606 = vmatprep.subr.mxu0 0.0
    %607 = vmatpush1.msra.mxu0 %v509
    %608 = vmatprep.subr.mxu0 0.0
    %609 = vmatpush1.msra.mxu0 %v510
    %610 = vmatprep.subr.mxu0 0.0
    %611 = vmatpush1.msra.mxu0 %v511
    %612 = vmatprep.subr.mxu0 0.0
    %613 = vmatpush1.msra.mxu0 %v512
    %614 = vmatprep.subr.mxu0 0.0
    %615 = vmatpush1.msra.mxu0 %v513
    %616 = vmatprep.subr.mxu0 0.0
    %617 = vmatpush1.msra.mxu0 %v514
    %618 = vmatprep.mubr.f32.mxu0 %v480
    %619 = vmatmul.mubr.f32.gmra.mrb[0].mxu0 %v479
    %v620 = vpop.f32.mrb[0].mxu0
    %v621 = vadd.f32 %v552, %v620
    %v622 = vpop.f32.mrb[0].mxu0
    %623 = vdwg.mxu0
    %624 = vmatprep.subr.mxu0 0.0
    %625 = vmatpush1.msra.mxu0 %v515
    %626 = vmatprep.subr.mxu0 0.0
    %627 = vmatpush1.msra.mxu0 %v516
    %628 = vmatprep.subr.mxu0 0.0
    %629 = vmatpush1.msra.mxu0 %v517
    %630 = vmatprep.subr.mxu0 0.0
    %631 = vmatpush1.msra.mxu0 %v518
    %632 = vmatprep.subr.mxu0 0.0
    %633 = vmatpush1.msra.mxu0 %v519
    %634 = vmatprep.subr.mxu0 0.0
    %635 = vmatpush1.msra.mxu0 %v520
    %636 = vmatprep.subr.mxu0 0.0
    %637 = vmatpush1.msra.mxu0 %v521
    %638 = vmatprep.subr.mxu0 0.0
    %639 = vmatpush1.msra.mxu0 %v522
    %640 = vmatprep.subr.mxu0 0.0
    %641 = vmatpush1.msra.mxu0 %v523
    %642 = vmatprep.subr.mxu0 0.0
    %643 = vmatpush1.msra.mxu0 %v524
    %644 = vmatprep.subr.mxu0 0.0
    %645 = vmatpush1.msra.mxu0 %v525
    %646 = vmatprep.subr.mxu0 0.0
    %647 = vmatpush1.msra.mxu0 %v526
    %648 = vmatprep.subr.mxu0 0.0
    %649 = vmatpush1.msra.mxu0 %v527
    %650 = vmatprep.subr.mxu0 0.0
    %651 = vmatpush1.msra.mxu0 %v528
    %652 = vmatprep.subr.mxu0 0.0
    %653 = vmatpush1.msra.mxu0 %v529
    %654 = vmatprep.subr.mxu0 0.0
    %655 = vmatpush1.msra.mxu0 %v530
    %656 = vmatprep.subr.mxu0 0.0
    %657 = vmatpush1.msra.mxu0 %v531
    %658 = vmatprep.subr.mxu0 0.0
    %659 = vmatpush1.msra.mxu0 %v532
    %660 = vmatprep.subr.mxu0 0.0
    %661 = vmatpush1.msra.mxu0 %v533
    %662 = vmatprep.subr.mxu0 0.0
    %663 = vmatpush1.msra.mxu0 %v534
    %664 = vmatprep.subr.mxu0 0.0
    %665 = vmatpush1.msra.mxu0 %v535
    %666 = vmatprep.subr.mxu0 0.0
    %667 = vmatpush1.msra.mxu0 %v536
    %668 = vmatprep.subr.mxu0 0.0
    %669 = vmatpush1.msra.mxu0 %v537
    %670 = vmatprep.subr.mxu0 0.0
    %671 = vmatpush1.msra.mxu0 %v538
    %672 = vmatprep.subr.mxu0 0.0
    %673 = vmatpush1.msra.mxu0 %v539
    %674 = vmatprep.subr.mxu0 0.0
    %675 = vmatpush1.msra.mxu0 %v540
    %676 = vmatprep.subr.mxu0 0.0
    %677 = vmatpush1.msra.mxu0 %v541
    %678 = vmatprep.subr.mxu0 0.0
    %679 = vmatpush1.msra.mxu0 %v542
    %680 = vmatprep.subr.mxu0 0.0
    %681 = vmatpush1.msra.mxu0 %v543
    %682 = vmatprep.subr.mxu0 0.0
    %683 = vmatpush1.msra.mxu0 %v544
    %684 = vmatprep.subr.mxu0 0.0
    %685 = vmatpush1.msra.mxu0 %v545
    %686 = vmatprep.subr.mxu0 0.0
    %687 = vmatpush1.msra.mxu0 %v546
    %688 = vmatprep.mubr.f32.mxu0 %v482
    %689 = vmatmul.mubr.f32.gmra.mrb[0].mxu0 %v481
    %v690 = vpop.f32.mrb[0].mxu0
    %v691 = vadd.f32 %v621, %v690
    %v692 = vpop.f32.mrb[0].mxu0
    %693 = vdwg.mxu0
    %694 = vst [vmem:[#allocation11] sm:$0xff] %v691
    // Predicated region
    $region46: #{tpu_custom_call.1} parent=1 // pred_check
      _
    $region47: #{tpu_custom_call.1} parent=1 // pred_check_branch
      %696 = sbr.rel (0) target = $region49
    $region48: #{tpu_custom_call.1} parent=1 // pred_region
      %s698 = ssub.s32 128, 128
      %699 = vsyncadd [#allocation5], %s698
      %s701 = sshll.u32 [#allocation11], 4
      %s702 = int_to_ptr.vmem [resolvable:$true] %s701
      %704 = dma.vmem_to_hbm [thread:$0]  %s702, 128, %s6, [#allocation5]
    $region49: #{tpu_custom_call.1} parent=1 // pred_fallthru
      _
    // Predicated region
    $region50: #{tpu_custom_call.1} parent=1 // pred_check
      _
    $region51: #{tpu_custom_call.1} parent=1 // pred_check_branch
      %706 = sbr.rel (0) target = $region53
    $region52: #{tpu_custom_call.1} parent=1 // pred_region
      %707 = dma.done [#allocation5], 128
    $region53: #{tpu_custom_call.1} parent=1 // pred_fallthru
      _
    %708 = vsyncpa [#allocation4], 1
    %709 = vsyncpa [#allocation7], 1
    %710 = vsyncpa [#allocation10], 1
    %711 = vsyncpa [#allocation5], 1

</llo_original>
